<compile_context>
chip_gen: v6e
topology: v6e:2x2x1
jax: 0.10.0
libtpu: 0.0.40
codegen_flags: <defaults>
</compile_context>

<pallas_src>
import functools

import numpy as np
import jax
import jax.numpy as jnp
from jax.experimental import pallas as pl
from jax.experimental.pallas import tpu as pltpu


# Layer dims of the PyTorch module: 100 -> 50 -> 25 -> 50 -> 100.
_DIMS = [(100, 50), (50, 25), (25, 50), (50, 100)]
_D_IN = _DIMS[0][0]           # 100
_D_OUT = _DIMS[-1][1]         # 100
_PAD = 128                    # lane-dense feature padding
_SLAB_ROWS = 4 * _PAD + 16    # 4 padded (128,128) weights + 4 contiguous bias
                              # rows, rounded to the bf16 16-row sublane tile


def _round_up(x, m):
    return (x + m - 1) // m * m


def _cdiv(a, b):
    return -(-a // b)


def _ae_kernel(x_ref, slab_ref, out_ref, xpad_ref):
    """x_ref: (TB,100) f32, slab_ref: (528,128) bf16, out_ref: (TB,100) f32,
    xpad_ref: (TB,128) f32 VMEM scratch (lane-padded input)."""
    tb, d_in = x_ref.shape

    # Static slices into the packed parameter slab (constant index_map keeps
    # it resident in VMEM across batch steps).
    w1 = slab_ref[0 * _PAD:1 * _PAD, :]
    w2 = slab_ref[1 * _PAD:2 * _PAD, :]
    w3 = slab_ref[2 * _PAD:3 * _PAD, :]
    w4 = slab_ref[3 * _PAD:4 * _PAD, :]
    bias = slab_ref[4 * _PAD:4 * _PAD + 8, :].astype(jnp.float32)  # aligned 8-row load
    b1 = bias[0:1, :]
    b2 = bias[1:2, :]
    b3 = bias[2:3, :]
    b4 = bias[3:4, :]

    # Zero-pad the (TB,100) input tile to 128 lanes in VMEM scratch.  Exact:
    # padded weight rows/cols and padded bias entries are zero and tanh(0)=0.
    # Re-zeroed every step (cheap VMEM store) -> correct under megacore
    # sharding of the parallel batch axis.
    xpad_ref[...] = jnp.zeros_like(xpad_ref)
    xpad_ref[:, :d_in] = x_ref[...]

    # bf16 operands -> MXU native rate; fp32 accumulation; fp32 bias + tanh
    # (v5e VPU/EUP have no bf16).
    z = xpad_ref[...].astype(jnp.bfloat16)
    z = jnp.tanh(jnp.dot(z, w1, preferred_element_type=jnp.float32) + b1)
    z = jnp.tanh(jnp.dot(z.astype(jnp.bfloat16), w2,
                         preferred_element_type=jnp.float32) + b2)
    z = jnp.tanh(jnp.dot(z.astype(jnp.bfloat16), w3,
                         preferred_element_type=jnp.float32) + b3)
    z = jnp.tanh(jnp.dot(z.astype(jnp.bfloat16), w4,
                         preferred_element_type=jnp.float32) + b4)

    # Emit (TB, 100) directly — no 128-wide write + slice HBM pass.
    out_ref[...] = z[:, :out_ref.shape[1]].astype(out_ref.dtype)


def pack_params(params, dtype=jnp.bfloat16):
    """Pack W1..W4 / b1..b4 ONCE (host-side) into a lane-dense (528,128) slab.

    Rows [128*i, 128*i+din), cols [0,dout) : W_{i+1} (stored [in, out]).
    Row  512 + i,            cols [0,dout) : b_{i+1}.
    Everything else is zero (exact under x @ W + b with tanh).
    Call at parameter-load time and pass the slab to autoencoder_forward.
    """
    slab = np.zeros((_SLAB_ROWS, _PAD), np.float32)
    for i, (din, dout) in enumerate(_DIMS):
        w = np.asarray(params[f"w{i + 1}"], np.float32)
        b = np.asarray(params[f"b{i + 1}"], np.float32).reshape(-1)
        slab[i * _PAD:i * _PAD + din, :dout] = w
        slab[4 * _PAD + i, :dout] = b
    return jnp.asarray(slab, dtype)


@functools.partial(jax.jit, static_argnames=("batch_tile",))
def autoencoder_forward(x, slab, batch_tile=1024):
    """x: [B, 100] float32, slab: (528, 128) bf16 from pack_params()."""
    B, f_in = x.shape
    assert f_in == _D_IN, f_in
    assert slab.shape == (_SLAB_ROWS, _PAD), slab.shape

    # Adaptive batch tile: fewest tiles of size <= batch_tile (rows multiple
    # of 8)  ->  at most 8*grid - 1 padded rows.  Force >= 2 grid steps once
    # there is enough work for both v7x TensorCores.
    num_tiles = max(1, _cdiv(B, batch_tile))
    if num_tiles == 1 and B >= 512:
        num_tiles = 2
    tb = _round_up(_cdiv(B, num_tiles), 8)
    b_pad = tb * num_tiles

    x_in = x if b_pad == B else jnp.pad(x, ((0, b_pad - B), (0, 0)))

    # VMEM @ tb=1024: ~2.9 MiB total (double-buffered in/out tiles + resident
    # slab + scratch) — well under every generation's scoped-VMEM default.
    # Only set vmem_limit_bytes if batch_tile is pushed past ~4096 on v5e.
    out = pl.pallas_call(
        _ae_kernel,
        out_shape=jax.ShapeDtypeStruct((b_pad, _D_OUT), x.dtype),
        grid=(num_tiles,),
        in_specs=[
            pl.BlockSpec((tb, _D_IN), lambda i: (i, 0)),           # batch tile
            pl.BlockSpec((_SLAB_ROWS, _PAD), lambda i: (0, 0)),    # resident weights
        ],
        out_specs=pl.BlockSpec((tb, _D_OUT), lambda i: (i, 0)),
        scratch_shapes=[pltpu.VMEM((tb, _PAD), jnp.float32)],
        compiler_params=pltpu.CompilerParams(
            dimension_semantics=("parallel",)),                    # megacore / v7x 2-TC
    )(x_in, slab)

    return out if b_pad == B else out[:B]


def init_params(key):
    """Mirror nn.Linear default init; W stored transposed as [in, out]."""
    params = {}
    for i, (din, dout) in enumerate(_DIMS, start=1):
        key, kw, kb = jax.random.split(key, 3)
        bound = 1.0 / jnp.sqrt(jnp.float32(din))
        params[f"w{i}"] = jax.random.uniform(kw, (din, dout), jnp.float32,
                                             -bound, bound)
        params[f"b{i}"] = jax.random.uniform(kb, (1, dout), jnp.float32,
                                             -bound, bound)
    return params


def autoencoder_ref(x, params, compute_dtype=jnp.float32):
    """Plain-JAX reference.  compute_dtype=bf16 mirrors the kernel's MXU path."""
    z = x
    for i in range(1, 5):
        w = params[f"w{i}"].astype(compute_dtype)
        b = params[f"b{i}"].astype(compute_dtype).astype(jnp.float32)
        z = jnp.tanh(jnp.dot(z.astype(compute_dtype), w,
                             preferred_element_type=jnp.float32) + b)
    return z


if __name__ == "__main__":
    key = jax.random.PRNGKey(0)
    key, kx = jax.random.split(key)

    B = 8
    x = jax.random.normal(kx, (B, 100), jnp.float32)
    params = init_params(key)
    slab = pack_params(params)              # packed once, outside the jitted forward

    out = autoencoder_forward(x, slab)
    out = jax.block_until_ready(out)
    assert out.shape == (B, 100), out.shape

    # Tight check against a reference using the same bf16-operand / f32-acc math.
    ref_bf16 = autoencoder_ref(x, params, compute_dtype=jnp.bfloat16)
    assert jnp.allclose(out, ref_bf16, atol=2e-3, rtol=2e-3), \
        "mismatch vs bf16-matmul reference"

    # Loose sanity check against the exact fp32 PyTorch-equivalent forward.
    ref_f32 = autoencoder_ref(x, params, compute_dtype=jnp.float32)
    assert jnp.allclose(out, ref_f32, atol=5e-2, rtol=5e-2), \
        "mismatch vs fp32 reference"

    print("KERNEL_OK")
</pallas_src>

<mosaic_0001>
module attributes {stable_mosaic.version = 11 : i64} {
  func.func @_ae_kernel(%arg0: i32, %arg1: memref<8x100xf32, #tpu.memory_space<vmem>>, %arg2: memref<528x128xbf16, #tpu.memory_space<vmem>>, %arg3: memref<8x100xf32, #tpu.memory_space<vmem>>, %arg4: memref<8x128xf32, #tpu.memory_space<vmem>>) attributes {dimension_semantics = [#tpu.dimension_semantics<parallel>], iteration_bounds = array<i64: 1>, scalar_prefetch = 0 : i64, scratch_operands = 1 : i64, tpu.core_type = #tpu.core_type<tc>, window_params = [{transform_indices = @transform_0, window_bounds = array<i64: 8, 100>}, {pipeline_mode = #tpu.pipeline_mode<synchronous>, transform_indices = @transform_1, window_bounds = array<i64: 528, 128>}, {transform_indices = @transform_2, window_bounds = array<i64: 8, 100>}]} {
    %c0 = arith.constant 0 : index
    %c0_0 = arith.constant 0 : index
    %0 = vector.load %arg2[%c0, %c0_0] : memref<528x128xbf16, #tpu.memory_space<vmem>>, vector<128x128xbf16>
    %c128 = arith.constant 128 : index
    %c0_1 = arith.constant 0 : index
    %1 = vector.load %arg2[%c128, %c0_1] : memref<528x128xbf16, #tpu.memory_space<vmem>>, vector<128x128xbf16>
    %c256 = arith.constant 256 : index
    %c0_2 = arith.constant 0 : index
    %2 = vector.load %arg2[%c256, %c0_2] : memref<528x128xbf16, #tpu.memory_space<vmem>>, vector<128x128xbf16>
    %c384 = arith.constant 384 : index
    %c0_3 = arith.constant 0 : index
    %3 = vector.load %arg2[%c384, %c0_3] : memref<528x128xbf16, #tpu.memory_space<vmem>>, vector<128x128xbf16>
    %c512 = arith.constant 512 : index
    %c0_4 = arith.constant 0 : index
    %4 = vector.load %arg2[%c512, %c0_4] : memref<528x128xbf16, #tpu.memory_space<vmem>>, vector<8x128xbf16>
    %5 = arith.extf %4 : vector<8x128xbf16> to vector<8x128xf32>
    %6 = vector.extract_strided_slice %5 {offsets = [0, 0], sizes = [1, 128], strides = [1, 1]} : vector<8x128xf32> to vector<1x128xf32>
    %7 = vector.extract_strided_slice %5 {offsets = [1, 0], sizes = [1, 128], strides = [1, 1]} : vector<8x128xf32> to vector<1x128xf32>
    %8 = vector.extract_strided_slice %5 {offsets = [2, 0], sizes = [1, 128], strides = [1, 1]} : vector<8x128xf32> to vector<1x128xf32>
    %9 = vector.extract_strided_slice %5 {offsets = [3, 0], sizes = [1, 128], strides = [1, 1]} : vector<8x128xf32> to vector<1x128xf32>
    %cst = arith.constant 0.000000e+00 : f32
    %10 = vector.broadcast %cst : f32 to vector<8x128xf32>
    %c0_5 = arith.constant 0 : index
    %c0_6 = arith.constant 0 : index
    %11 = vector.load %arg4[%c0_5, %c0_6] : memref<8x128xf32, #tpu.memory_space<vmem>>, vector<8x128xf32>
    tpu.vector_store %arg4[%c0_5, %c0_6], %10 {strides = array<i32>} : memref<8x128xf32, #tpu.memory_space<vmem>>, vector<8x128xf32>,
    %c0_7 = arith.constant 0 : index
    %c0_8 = arith.constant 0 : index
    %12 = vector.load %arg1[%c0_7, %c0_8] : memref<8x100xf32, #tpu.memory_space<vmem>>, vector<8x100xf32>
    %c0_9 = arith.constant 0 : index
    %c0_10 = arith.constant 0 : index
    %13 = vector.load %arg4[%c0_9, %c0_10] : memref<8x128xf32, #tpu.memory_space<vmem>>, vector<8x100xf32>
    tpu.vector_store %arg4[%c0_9, %c0_10], %12 {strides = array<i32>} : memref<8x128xf32, #tpu.memory_space<vmem>>, vector<8x100xf32>,
    %c0_11 = arith.constant 0 : index
    %c0_12 = arith.constant 0 : index
    %14 = vector.load %arg4[%c0_11, %c0_12] : memref<8x128xf32, #tpu.memory_space<vmem>>, vector<8x128xf32>
    %15 = arith.truncf %14 : vector<8x128xf32> to vector<8x128xbf16>
    %cst_13 = arith.constant dense<0.000000e+00> : vector<8x128xf32>
    %16 = tpu.matmul %15, %0, %cst_13 {dimension_numbers = #tpu.dot_dimension_numbers<[1], [0], [0], [1], [0, 0, 1, 1], [], []>} : vector<8x128xbf16>, vector<128x128xbf16>, vector<8x128xf32> -> vector<8x128xf32>
    %17 = vector.broadcast %6 : vector<1x128xf32> to vector<8x128xf32>
    %18 = arith.addf %16, %17 : vector<8x128xf32>
    %19 = math.tanh %18 : vector<8x128xf32>
    %20 = arith.truncf %19 : vector<8x128xf32> to vector<8x128xbf16>
    %cst_14 = arith.constant dense<0.000000e+00> : vector<8x128xf32>
    %21 = tpu.matmul %20, %1, %cst_14 {dimension_numbers = #tpu.dot_dimension_numbers<[1], [0], [0], [1], [0, 0, 1, 1], [], []>} : vector<8x128xbf16>, vector<128x128xbf16>, vector<8x128xf32> -> vector<8x128xf32>
    %22 = vector.broadcast %7 : vector<1x128xf32> to vector<8x128xf32>
    %23 = arith.addf %21, %22 : vector<8x128xf32>
    %24 = math.tanh %23 : vector<8x128xf32>
    %25 = arith.truncf %24 : vector<8x128xf32> to vector<8x128xbf16>
    %cst_15 = arith.constant dense<0.000000e+00> : vector<8x128xf32>
    %26 = tpu.matmul %25, %2, %cst_15 {dimension_numbers = #tpu.dot_dimension_numbers<[1], [0], [0], [1], [0, 0, 1, 1], [], []>} : vector<8x128xbf16>, vector<128x128xbf16>, vector<8x128xf32> -> vector<8x128xf32>
    %27 = vector.broadcast %8 : vector<1x128xf32> to vector<8x128xf32>
    %28 = arith.addf %26, %27 : vector<8x128xf32>
    %29 = math.tanh %28 : vector<8x128xf32>
    %30 = arith.truncf %29 : vector<8x128xf32> to vector<8x128xbf16>
    %cst_16 = arith.constant dense<0.000000e+00> : vector<8x128xf32>
    %31 = tpu.matmul %30, %3, %cst_16 {dimension_numbers = #tpu.dot_dimension_numbers<[1], [0], [0], [1], [0, 0, 1, 1], [], []>} : vector<8x128xbf16>, vector<128x128xbf16>, vector<8x128xf32> -> vector<8x128xf32>
    %32 = vector.broadcast %9 : vector<1x128xf32> to vector<8x128xf32>
    %33 = arith.addf %31, %32 : vector<8x128xf32>
    %34 = math.tanh %33 : vector<8x128xf32>
    %35 = vector.extract_strided_slice %34 {offsets = [0, 0], sizes = [8, 100], strides = [1, 1]} : vector<8x128xf32> to vector<8x100xf32>
    %c0_17 = arith.constant 0 : index
    %c0_18 = arith.constant 0 : index
    %36 = vector.load %arg3[%c0_17, %c0_18] : memref<8x100xf32, #tpu.memory_space<vmem>>, vector<8x100xf32>
    tpu.vector_store %arg3[%c0_17, %c0_18], %35 {strides = array<i32>} : memref<8x100xf32, #tpu.memory_space<vmem>>, vector<8x100xf32>,
    return
  }
  func.func @transform_0(%arg0: i32) -> (i32, i32) {
    %c0_i32 = arith.constant 0 : i32
    %c0_i32_0 = arith.constant 0 : i32
    return %arg0, %c0_i32 : i32, i32
  }
  func.func @transform_1(%arg0: i32) -> (i32, i32) {
    %c0_i32 = arith.constant 0 : i32
    %c0_i32_0 = arith.constant 0 : i32
    %c0_i32_1 = arith.constant 0 : i32
    return %c0_i32, %c0_i32_0 : i32, i32
  }
  func.func @transform_2(%arg0: i32) -> (i32, i32) {
    %c0_i32 = arith.constant 0 : i32
    %c0_i32_0 = arith.constant 0 : i32
    return %arg0, %c0_i32 : i32, i32
  }
}

</mosaic_0001>

<llo_original>
// kernel: autoencoder_forward.1
$region0: #{autoencoder_forward.1}
  #allocation0 [shape = 'u32[]', space=smem, size = 0x4, offset = 0x4, fixed_abs, tag = 'smem constant byte address 0x4 - core index']
  #allocation1 [shape = 'u32[144,128]{1,0:T(1,128)}', space=vmem, size = 0x12000, scoped, tag = 'internal scratch']
  #allocation2 [shape = 'f32[8,128]{1,0:T(8,128)}', space=vmem, size = 0x1000, scoped, tag = 'scratch operand']
  %s0 = inlined_call_operand.hbm [shape: f32[8,100], index: 0, kind: input, shape index: {}]
  %s1 = inlined_call_operand.hbm [shape: bf16[528,128], index: 1, kind: input, shape index: {}]
  %s2 = inlined_call_operand.hbm [shape: f32[8,100], index: 2, kind: output, shape index: {}]
  %s3 = sld [smem:[#allocation0]]
  $region26: #{autoencoder_forward.1} parent=0
    _
  %s5 = ssub.s32 1, %s3
  %s6 = scalar_select 0, %s5, %s3
  $region1: #{autoencoder_forward.1} parent=0
    #allocation3 [shape = 'u8[4096]{0}', space=vmem, size = 0x1000, scoped, tag = 'input window, operand 0, single buffered']
    #allocation4 [shape = 's32[1]{0}', space=sflag, size = 0x4, scoped, tag = 'scoped memory for autoencoder_forward.1']
    #allocation5 [shape = 's32[1]{0}', space=sflag, size = 0x4, scoped, tag = 'scoped memory for autoencoder_forward.1']
    #allocation6 [shape = 'u8[135168]{0}', space=vmem, size = 0x21000, scoped, tag = 'input window, operand 1, single buffered']
    #allocation7 [shape = 's32[1]{0}', space=sflag, size = 0x4, scoped, tag = 'scoped memory for autoencoder_forward.1']
    #allocation8 [shape = 'u8[4096]{0}', space=vmem, size = 0x1000, scoped, tag = 'output window, operand 0, single buffered']
    %7 = vsyncpa [#allocation4], 0
    %8 = vsyncpa [#allocation7], 0
    %9 = vsyncpa [#allocation5], 0
    // Predicated region
    $region2: #{autoencoder_forward.1} parent=1 // pred_check
      _
    $region3: #{autoencoder_forward.1} parent=1 // pred_check_branch
      %11 = sbr.rel (0) target = $region5
    $region4: #{autoencoder_forward.1} parent=1 // pred_region
      %s13 = ssub.s32 128, 128
      %14 = vsyncadd [#allocation4], %s13
      %s16 = sshll.u32 [#allocation3], 4
      %s17 = int_to_ptr.vmem [resolvable:$true] %s16
      %19 = dma.hbm_to_vmem [thread:$0]  %s0, 128, %s17, [#allocation4]
    $region5: #{autoencoder_forward.1} parent=1 // pred_fallthru
      _
    // Predicated region
    $region6: #{autoencoder_forward.1} parent=1 // pred_check
      _
    $region7: #{autoencoder_forward.1} parent=1 // pred_check_branch
      %21 = sbr.rel (0) target = $region9
    $region8: #{autoencoder_forward.1} parent=1 // pred_region
      %s23 = ssub.s32 4224, 4224
      %24 = vsyncadd [#allocation7], %s23
      %s25 = sshll.u32 [#allocation6], 4
      %s26 = int_to_ptr.vmem [resolvable:$true] %s25
      %31 = dma.hbm_to_vmem [thread:$0]  %s1, 4224, %s26, [#allocation7], 64, 64, 4
    $region9: #{autoencoder_forward.1} parent=1 // pred_fallthru
      _
    // Predicated region
    $region10: #{autoencoder_forward.1} parent=1 // pred_check
      _
    $region11: #{autoencoder_forward.1} parent=1 // pred_check_branch
      %33 = sbr.rel (0) target = $region13
    $region12: #{autoencoder_forward.1} parent=1 // pred_region
      %34 = dma.done [#allocation4], 128
    $region13: #{autoencoder_forward.1} parent=1 // pred_fallthru
      _
    // Predicated region
    $region14: #{autoencoder_forward.1} parent=1 // pred_check
      _
    $region15: #{autoencoder_forward.1} parent=1 // pred_check_branch
      %36 = sbr.rel (0) target = $region17
    $region16: #{autoencoder_forward.1} parent=1 // pred_region
      %37 = dma.done [#allocation7], 4224
    $region17: #{autoencoder_forward.1} parent=1 // pred_fallthru
      _
    %v39 = vld [vmem:[#allocation6] sm:$0xf]
    %v40 = vld [vmem:[#allocation6 + $0x4] sm:$0xf]
    %v41 = vld [vmem:[#allocation6 + $0x8] sm:$0xf]
    %v42 = vld [vmem:[#allocation6 + $0xc] sm:$0xf]
    %v43 = vld [vmem:[#allocation6 + $0x10] sm:$0xf]
    %v44 = vld [vmem:[#allocation6 + $0x14] sm:$0xf]
    %v45 = vld [vmem:[#allocation6 + $0x18] sm:$0xf]
    %v46 = vld [vmem:[#allocation6 + $0x1c] sm:$0xf]
    %v47 = vld [vmem:[#allocation6 + $0x20] sm:$0xf]
    %v48 = vld [vmem:[#allocation6 + $0x24] sm:$0xf]
    %v49 = vld [vmem:[#allocation6 + $0x28] sm:$0xf]
    %v50 = vld [vmem:[#allocation6 + $0x2c] sm:$0xf]
    %v51 = vld [vmem:[#allocation6 + $0x30] sm:$0xf]
    %v52 = vld [vmem:[#allocation6 + $0x34] sm:$0xf]
    %v53 = vld [vmem:[#allocation6 + $0x38] sm:$0xf]
    %v54 = vld [vmem:[#allocation6 + $0x3c] sm:$0xf]
    %v55 = vld [vmem:[#allocation6 + $0x40] sm:$0xf]
    %v56 = vld [vmem:[#allocation6 + $0x44] sm:$0xf]
    %v57 = vld [vmem:[#allocation6 + $0x48] sm:$0xf]
    %v58 = vld [vmem:[#allocation6 + $0x4c] sm:$0xf]
    %v59 = vld [vmem:[#allocation6 + $0x50] sm:$0xf]
    %v60 = vld [vmem:[#allocation6 + $0x54] sm:$0xf]
    %v61 = vld [vmem:[#allocation6 + $0x58] sm:$0xf]
    %v62 = vld [vmem:[#allocation6 + $0x5c] sm:$0xf]
    %v63 = vld [vmem:[#allocation6 + $0x60] sm:$0xf]
    %v64 = vld [vmem:[#allocation6 + $0x64] sm:$0xf]
    %v65 = vld [vmem:[#allocation6 + $0x68] sm:$0xf]
    %v66 = vld [vmem:[#allocation6 + $0x6c] sm:$0xf]
    %v67 = vld [vmem:[#allocation6 + $0x70] sm:$0xf]
    %v68 = vld [vmem:[#allocation6 + $0x74] sm:$0xf]
    %v69 = vld [vmem:[#allocation6 + $0x78] sm:$0xf]
    %v70 = vld [vmem:[#allocation6 + $0x7c] sm:$0xf]
    %v71 = vld [vmem:[#allocation6 + $0x80] sm:$0xf]
    %v72 = vld [vmem:[#allocation6 + $0x84] sm:$0xf]
    %v73 = vld [vmem:[#allocation6 + $0x88] sm:$0xf]
    %v74 = vld [vmem:[#allocation6 + $0x8c] sm:$0xf]
    %v75 = vld [vmem:[#allocation6 + $0x90] sm:$0xf]
    %v76 = vld [vmem:[#allocation6 + $0x94] sm:$0xf]
    %v77 = vld [vmem:[#allocation6 + $0x98] sm:$0xf]
    %v78 = vld [vmem:[#allocation6 + $0x9c] sm:$0xf]
    %v79 = vld [vmem:[#allocation6 + $0xa0] sm:$0xf]
    %v80 = vld [vmem:[#allocation6 + $0xa4] sm:$0xf]
    %v81 = vld [vmem:[#allocation6 + $0xa8] sm:$0xf]
    %v82 = vld [vmem:[#allocation6 + $0xac] sm:$0xf]
    %v83 = vld [vmem:[#allocation6 + $0xb0] sm:$0xf]
    %v84 = vld [vmem:[#allocation6 + $0xb4] sm:$0xf]
    %v85 = vld [vmem:[#allocation6 + $0xb8] sm:$0xf]
    %v86 = vld [vmem:[#allocation6 + $0xbc] sm:$0xf]
    %v87 = vld [vmem:[#allocation6 + $0xc0] sm:$0xf]
    %v88 = vld [vmem:[#allocation6 + $0xc4] sm:$0xf]
    %v89 = vld [vmem:[#allocation6 + $0xc8] sm:$0xf]
    %v90 = vld [vmem:[#allocation6 + $0xcc] sm:$0xf]
    %v91 = vld [vmem:[#allocation6 + $0xd0] sm:$0xf]
    %v92 = vld [vmem:[#allocation6 + $0xd4] sm:$0xf]
    %v93 = vld [vmem:[#allocation6 + $0xd8] sm:$0xf]
    %v94 = vld [vmem:[#allocation6 + $0xdc] sm:$0xf]
    %v95 = vld [vmem:[#allocation6 + $0xe0] sm:$0xf]
    %v96 = vld [vmem:[#allocation6 + $0xe4] sm:$0xf]
    %v97 = vld [vmem:[#allocation6 + $0xe8] sm:$0xf]
    %v98 = vld [vmem:[#allocation6 + $0xec] sm:$0xf]
    %v99 = vld [vmem:[#allocation6 + $0xf0] sm:$0xf]
    %v100 = vld [vmem:[#allocation6 + $0xf4] sm:$0xf]
    %v101 = vld [vmem:[#allocation6 + $0xf8] sm:$0xf]
    %v102 = vld [vmem:[#allocation6 + $0xfc] sm:$0xf]
    %v103 = vld [vmem:[#allocation6 + $0x100] sm:$0xf]
    %v104 = vunpack.c.l.bf16 %v103
    %105 = vst [vmem:[#allocation2] sm:$0xff] 0.0
    %v106 = vld [vmem:[#allocation3] sm:$0xff]
    %vm107 = vcmask 818176
    %108 = vst.msk [vmem:[#allocation2] sm:$0xff] %vm107, %v106
    %v109 = vld [vmem:[#allocation2] sm:$0xff]
    %v110 = vpack.c.bf16 %v109, %v109
    %v111 = vlaneseq
    %v112 = vshrl.u32 %v111, 7
    %v113 = vsub.s32 0, %v112
    %v114 = vrot.slane %v104, %v113
    %v131 = vunpack.c.l.b16 %v39
    %v132 = vunpack.c.l.b16 %v40
    %v133 = vunpack.c.l.b16 %v41
    %v134 = vunpack.c.l.b16 %v42
    %v135 = vunpack.c.l.b16 %v43
    %v136 = vunpack.c.l.b16 %v44
    %v137 = vunpack.c.l.b16 %v45
    %v138 = vunpack.c.l.b16 %v46
    %v139 = vunpack.c.l.b16 %v47
    %v140 = vunpack.c.l.b16 %v48
    %v141 = vunpack.c.l.b16 %v49
    %v142 = vunpack.c.l.b16 %v50
    %v143 = vunpack.c.l.b16 %v51
    %v144 = vunpack.c.l.b16 %v52
    %v145 = vunpack.c.l.b16 %v53
    %v146 = vunpack.c.l.b16 %v54
    %v147 = vpack.c.b16 %v132, %v131
    %v148 = vpack.c.b16 %v134, %v133
    %v149 = vpack.c.b16 %v136, %v135
    %v150 = vpack.c.b16 %v138, %v137
    %v151 = vpack.c.b16 %v140, %v139
    %v152 = vpack.c.b16 %v142, %v141
    %v153 = vpack.c.b16 %v144, %v143
    %v154 = vpack.c.b16 %v146, %v145
    %163 = vmatprep.subr.bf16.mxu0 0
    %164 = vmatpush1.bf16.msra.mxu0 %v154
    %165 = vmatprep.subr.bf16.mxu0 0
    %166 = vmatpush1.bf16.msra.mxu0 %v153
    %167 = vmatprep.subr.bf16.mxu0 0
    %168 = vmatpush1.bf16.msra.mxu0 %v152
    %169 = vmatprep.subr.bf16.mxu0 0
    %170 = vmatpush1.bf16.msra.mxu0 %v151
    %171 = vmatprep.subr.bf16.mxu0 0
    %172 = vmatpush1.bf16.msra.mxu0 %v150
    %173 = vmatprep.subr.bf16.mxu0 0
    %174 = vmatpush1.bf16.msra.mxu0 %v149
    %175 = vmatprep.subr.bf16.mxu0 0
    %176 = vmatpush1.bf16.msra.mxu0 %v148
    %177 = vmatprep.subr.bf16.mxu0 0
    %178 = vmatpush1.bf16.msra.mxu0 %v147
    %179 = vmatprep.subr.bf16.mxu0 0
    %180 = vmatpush2.bf16.msra.mxu0 0
    %181 = vmatprep.subr.bf16.mxu0 0
    %182 = vmatpush2.bf16.msra.mxu0 0
    %183 = vmatprep.subr.bf16.mxu0 0
    %184 = vmatpush2.bf16.msra.mxu0 0
    %185 = vmatprep.subr.bf16.mxu0 0
    %186 = vmatpush2.bf16.msra.mxu0 0
    %187 = vmatprep.subr.bf16.mxu0 0
    %188 = vmatpush2.bf16.msra.mxu0 0
    %189 = vmatprep.subr.bf16.mxu0 0
    %190 = vmatpush2.bf16.msra.mxu0 0
    %191 = vmatprep.subr.bf16.mxu0 0
    %192 = vmatpush2.bf16.msra.mxu0 0
    %193 = vmatprep.subr.bf16.mxu0 0
    %194 = vmatpush2.bf16.msra.mxu0 0
    %195 = vmatprep.mubr.bf16.mxu0 0
    %196 = vmatmul.mubr.bf16.gmra.mxu0 %v110
    %v197 = vpop.f32.mrf.mxu0
    %v198 = vadd.f32 %v114, %v197
    %v199 = vpop.f32.mrf.mxu0
    %v200 = vpop.f32.mrf.mxu0
    %v201 = vpop.f32.mrf.mxu0
    %202 = vdwg.mxu0
    %v203 = vtanh.pop %v198
    %v204 = vpack.c.bf16 %v203, %v203
    %v205 = vlaneseq
    %v206 = vshrl.u32 %v205, 7
    %v207 = vsub.s32 1, %v206
    %v208 = vrot.slane %v104, %v207
    %v225 = vunpack.c.l.b16 %v55
    %v226 = vunpack.c.l.b16 %v56
    %v227 = vunpack.c.l.b16 %v57
    %v228 = vunpack.c.l.b16 %v58
    %v229 = vunpack.c.l.b16 %v59
    %v230 = vunpack.c.l.b16 %v60
    %v231 = vunpack.c.l.b16 %v61
    %v232 = vunpack.c.l.b16 %v62
    %v233 = vunpack.c.l.b16 %v63
    %v234 = vunpack.c.l.b16 %v64
    %v235 = vunpack.c.l.b16 %v65
    %v236 = vunpack.c.l.b16 %v66
    %v237 = vunpack.c.l.b16 %v67
    %v238 = vunpack.c.l.b16 %v68
    %v239 = vunpack.c.l.b16 %v69
    %v240 = vunpack.c.l.b16 %v70
    %v241 = vpack.c.b16 %v226, %v225
    %v242 = vpack.c.b16 %v228, %v227
    %v243 = vpack.c.b16 %v230, %v229
    %v244 = vpack.c.b16 %v232, %v231
    %v245 = vpack.c.b16 %v234, %v233
    %v246 = vpack.c.b16 %v236, %v235
    %v247 = vpack.c.b16 %v238, %v237
    %v248 = vpack.c.b16 %v240, %v239
    %257 = vmatprep.subr.bf16.mxu0 0
    %258 = vmatpush1.bf16.msra.mxu0 %v248
    %259 = vmatprep.subr.bf16.mxu0 0
    %260 = vmatpush1.bf16.msra.mxu0 %v247
    %261 = vmatprep.subr.bf16.mxu0 0
    %262 = vmatpush1.bf16.msra.mxu0 %v246
    %263 = vmatprep.subr.bf16.mxu0 0
    %264 = vmatpush1.bf16.msra.mxu0 %v245
    %265 = vmatprep.subr.bf16.mxu0 0
    %266 = vmatpush1.bf16.msra.mxu0 %v244
    %267 = vmatprep.subr.bf16.mxu0 0
    %268 = vmatpush1.bf16.msra.mxu0 %v243
    %269 = vmatprep.subr.bf16.mxu0 0
    %270 = vmatpush1.bf16.msra.mxu0 %v242
    %271 = vmatprep.subr.bf16.mxu0 0
    %272 = vmatpush1.bf16.msra.mxu0 %v241
    %273 = vmatprep.subr.bf16.mxu0 0
    %274 = vmatpush2.bf16.msra.mxu0 0
    %275 = vmatprep.subr.bf16.mxu0 0
    %276 = vmatpush2.bf16.msra.mxu0 0
    %277 = vmatprep.subr.bf16.mxu0 0
    %278 = vmatpush2.bf16.msra.mxu0 0
    %279 = vmatprep.subr.bf16.mxu0 0
    %280 = vmatpush2.bf16.msra.mxu0 0
    %281 = vmatprep.subr.bf16.mxu0 0
    %282 = vmatpush2.bf16.msra.mxu0 0
    %283 = vmatprep.subr.bf16.mxu0 0
    %284 = vmatpush2.bf16.msra.mxu0 0
    %285 = vmatprep.subr.bf16.mxu0 0
    %286 = vmatpush2.bf16.msra.mxu0 0
    %287 = vmatprep.subr.bf16.mxu0 0
    %288 = vmatpush2.bf16.msra.mxu0 0
    %289 = vmatprep.mubr.bf16.mxu0 0
    %290 = vmatmul.mubr.bf16.gmra.mxu0 %v204
    %v291 = vpop.f32.mrf.mxu0
    %v292 = vadd.f32 %v208, %v291
    %v293 = vpop.f32.mrf.mxu0
    %v294 = vpop.f32.mrf.mxu0
    %v295 = vpop.f32.mrf.mxu0
    %296 = vdwg.mxu0
    %v297 = vtanh.pop %v292
    %v298 = vpack.c.bf16 %v297, %v297
    %v299 = vlaneseq
    %v300 = vshrl.u32 %v299, 7
    %v301 = vsub.s32 2, %v300
    %v302 = vrot.slane %v104, %v301
    %v319 = vunpack.c.l.b16 %v71
    %v320 = vunpack.c.l.b16 %v72
    %v321 = vunpack.c.l.b16 %v73
    %v322 = vunpack.c.l.b16 %v74
    %v323 = vunpack.c.l.b16 %v75
    %v324 = vunpack.c.l.b16 %v76
    %v325 = vunpack.c.l.b16 %v77
    %v326 = vunpack.c.l.b16 %v78
    %v327 = vunpack.c.l.b16 %v79
    %v328 = vunpack.c.l.b16 %v80
    %v329 = vunpack.c.l.b16 %v81
    %v330 = vunpack.c.l.b16 %v82
    %v331 = vunpack.c.l.b16 %v83
    %v332 = vunpack.c.l.b16 %v84
    %v333 = vunpack.c.l.b16 %v85
    %v334 = vunpack.c.l.b16 %v86
    %v335 = vpack.c.b16 %v320, %v319
    %v336 = vpack.c.b16 %v322, %v321
    %v337 = vpack.c.b16 %v324, %v323
    %v338 = vpack.c.b16 %v326, %v325
    %v339 = vpack.c.b16 %v328, %v327
    %v340 = vpack.c.b16 %v330, %v329
    %v341 = vpack.c.b16 %v332, %v331
    %v342 = vpack.c.b16 %v334, %v333
    %351 = vmatprep.subr.bf16.mxu0 0
    %352 = vmatpush1.bf16.msra.mxu0 %v342
    %353 = vmatprep.subr.bf16.mxu0 0
    %354 = vmatpush1.bf16.msra.mxu0 %v341
    %355 = vmatprep.subr.bf16.mxu0 0
    %356 = vmatpush1.bf16.msra.mxu0 %v340
    %357 = vmatprep.subr.bf16.mxu0 0
    %358 = vmatpush1.bf16.msra.mxu0 %v339
    %359 = vmatprep.subr.bf16.mxu0 0
    %360 = vmatpush1.bf16.msra.mxu0 %v338
    %361 = vmatprep.subr.bf16.mxu0 0
    %362 = vmatpush1.bf16.msra.mxu0 %v337
    %363 = vmatprep.subr.bf16.mxu0 0
    %364 = vmatpush1.bf16.msra.mxu0 %v336
    %365 = vmatprep.subr.bf16.mxu0 0
    %366 = vmatpush1.bf16.msra.mxu0 %v335
    %367 = vmatprep.subr.bf16.mxu0 0
    %368 = vmatpush2.bf16.msra.mxu0 0
    %369 = vmatprep.subr.bf16.mxu0 0
    %370 = vmatpush2.bf16.msra.mxu0 0
    %371 = vmatprep.subr.bf16.mxu0 0
    %372 = vmatpush2.bf16.msra.mxu0 0
    %373 = vmatprep.subr.bf16.mxu0 0
    %374 = vmatpush2.bf16.msra.mxu0 0
    %375 = vmatprep.subr.bf16.mxu0 0
    %376 = vmatpush2.bf16.msra.mxu0 0
    %377 = vmatprep.subr.bf16.mxu0 0
    %378 = vmatpush2.bf16.msra.mxu0 0
    %379 = vmatprep.subr.bf16.mxu0 0
    %380 = vmatpush2.bf16.msra.mxu0 0
    %381 = vmatprep.subr.bf16.mxu0 0
    %382 = vmatpush2.bf16.msra.mxu0 0
    %383 = vmatprep.mubr.bf16.mxu0 0
    %384 = vmatmul.mubr.bf16.gmra.mxu0 %v298
    %v385 = vpop.f32.mrf.mxu0
    %v386 = vadd.f32 %v302, %v385
    %v387 = vpop.f32.mrf.mxu0
    %v388 = vpop.f32.mrf.mxu0
    %v389 = vpop.f32.mrf.mxu0
    %390 = vdwg.mxu0
    %v391 = vtanh.pop %v386
    %v392 = vpack.c.bf16 %v391, %v391
    %v393 = vlaneseq
    %v394 = vshrl.u32 %v393, 7
    %v395 = vsub.s32 3, %v394
    %v396 = vrot.slane %v104, %v395
    %v413 = vunpack.c.l.b16 %v87
    %v414 = vunpack.c.l.b16 %v88
    %v415 = vunpack.c.l.b16 %v89
    %v416 = vunpack.c.l.b16 %v90
    %v417 = vunpack.c.l.b16 %v91
    %v418 = vunpack.c.l.b16 %v92
    %v419 = vunpack.c.l.b16 %v93
    %v420 = vunpack.c.l.b16 %v94
    %v421 = vunpack.c.l.b16 %v95
    %v422 = vunpack.c.l.b16 %v96
    %v423 = vunpack.c.l.b16 %v97
    %v424 = vunpack.c.l.b16 %v98
    %v425 = vunpack.c.l.b16 %v99
    %v426 = vunpack.c.l.b16 %v100
    %v427 = vunpack.c.l.b16 %v101
    %v428 = vunpack.c.l.b16 %v102
    %v429 = vpack.c.b16 %v414, %v413
    %v430 = vpack.c.b16 %v416, %v415
    %v431 = vpack.c.b16 %v418, %v417
    %v432 = vpack.c.b16 %v420, %v419
    %v433 = vpack.c.b16 %v422, %v421
    %v434 = vpack.c.b16 %v424, %v423
    %v435 = vpack.c.b16 %v426, %v425
    %v436 = vpack.c.b16 %v428, %v427
    %445 = vmatprep.subr.bf16.mxu0 0
    %446 = vmatpush1.bf16.msra.mxu0 %v436
    %447 = vmatprep.subr.bf16.mxu0 0
    %448 = vmatpush1.bf16.msra.mxu0 %v435
    %449 = vmatprep.subr.bf16.mxu0 0
    %450 = vmatpush1.bf16.msra.mxu0 %v434
    %451 = vmatprep.subr.bf16.mxu0 0
    %452 = vmatpush1.bf16.msra.mxu0 %v433
    %453 = vmatprep.subr.bf16.mxu0 0
    %454 = vmatpush1.bf16.msra.mxu0 %v432
    %455 = vmatprep.subr.bf16.mxu0 0
    %456 = vmatpush1.bf16.msra.mxu0 %v431
    %457 = vmatprep.subr.bf16.mxu0 0
    %458 = vmatpush1.bf16.msra.mxu0 %v430
    %459 = vmatprep.subr.bf16.mxu0 0
    %460 = vmatpush1.bf16.msra.mxu0 %v429
    %461 = vmatprep.subr.bf16.mxu0 0
    %462 = vmatpush2.bf16.msra.mxu0 0
    %463 = vmatprep.subr.bf16.mxu0 0
    %464 = vmatpush2.bf16.msra.mxu0 0
    %465 = vmatprep.subr.bf16.mxu0 0
    %466 = vmatpush2.bf16.msra.mxu0 0
    %467 = vmatprep.subr.bf16.mxu0 0
    %468 = vmatpush2.bf16.msra.mxu0 0
    %469 = vmatprep.subr.bf16.mxu0 0
    %470 = vmatpush2.bf16.msra.mxu0 0
    %471 = vmatprep.subr.bf16.mxu0 0
    %472 = vmatpush2.bf16.msra.mxu0 0
    %473 = vmatprep.subr.bf16.mxu0 0
    %474 = vmatpush2.bf16.msra.mxu0 0
    %475 = vmatprep.subr.bf16.mxu0 0
    %476 = vmatpush2.bf16.msra.mxu0 0
    %477 = vmatprep.mubr.bf16.mxu0 0
    %478 = vmatmul.mubr.bf16.gmra.mxu0 %v392
    %v479 = vpop.f32.mrf.mxu0
    %v480 = vadd.f32 %v396, %v479
    %v481 = vpop.f32.mrf.mxu0
    %v482 = vpop.f32.mrf.mxu0
    %v483 = vpop.f32.mrf.mxu0
    %484 = vdwg.mxu0
    %v485 = vtanh.pop %v480
    %486 = vst.msk [vmem:[#allocation8] sm:$0xff] %vm107, %v485
    // Predicated region
    $region18: #{autoencoder_forward.1} parent=1 // pred_check
      _
    $region19: #{autoencoder_forward.1} parent=1 // pred_check_branch
      %488 = sbr.rel (0) target = $region21
    $region20: #{autoencoder_forward.1} parent=1 // pred_region
      %s490 = ssub.s32 128, 128
      %491 = vsyncadd [#allocation5], %s490
      %s493 = sshll.u32 [#allocation8], 4
      %s494 = int_to_ptr.vmem [resolvable:$true] %s493
      %496 = dma.vmem_to_hbm [thread:$0]  %s494, 128, %s2, [#allocation5]
    $region21: #{autoencoder_forward.1} parent=1 // pred_fallthru
      _
    // Predicated region
    $region22: #{autoencoder_forward.1} parent=1 // pred_check
      _
    $region23: #{autoencoder_forward.1} parent=1 // pred_check_branch
      %498 = sbr.rel (0) target = $region25
    $region24: #{autoencoder_forward.1} parent=1 // pred_region
      %499 = dma.done [#allocation5], 128
    $region25: #{autoencoder_forward.1} parent=1 // pred_fallthru
      _
    %500 = vsyncpa [#allocation4], 1
    %501 = vsyncpa [#allocation7], 1
    %502 = vsyncpa [#allocation5], 1

</llo_original>
